<compile_context>
chip_gen: v6e
topology: v6e:2x2x1
jax: 0.10.0
libtpu: 0.0.40
codegen_flags: <defaults>
</compile_context>

<pallas_src>
import jax
import jax.numpy as jnp
from jax.experimental import pallas as pl
from jax.experimental.pallas import tpu as pltpu

_LANE_SMALL = 128
_LANE_LARGE = 512           # lane-dense slab width for large arrays
_MAX_TILE_ROWS = 512        # 512 rows x 512 lanes x 4 B = 1 MiB per f32 tile


def _ceil_to(x, m):
    return -(-x // m) * m


def _slab_geometry(size):
    """Static (lane, tile_rows, rows_padded) for a flat array of `size` elems."""
    lane = _LANE_LARGE if size >= _LANE_LARGE * 16 else _LANE_SMALL
    rows = -(-size // lane)
    tile_rows = _ceil_to(max(1, min(_MAX_TILE_ROWS, rows)), 8)  # sublane-aligned
    rows_padded = _ceil_to(rows, tile_rows)                     # grid divides evenly
    return lane, tile_rows, rows_padded


def _running_mean_kernel(scal_ref, mean_ref, x_ref, out_ref):
    # scal_ref: SMEM f32[2] = [coeff = (n-1)/n, inv_n = 1/n].
    coeff = scal_ref[0]
    inv_n = scal_ref[1]
    m = mean_ref[...].astype(jnp.float32)   # compute in f32 (v5e has no bf16 VPU)
    x = x_ref[...].astype(jnp.float32)
    out_ref[...] = (m * coeff + x * inv_n).astype(out_ref.dtype)


@jax.jit
def _running_mean_update(mean, x, n):
    """(mean * (n-1) + x) / n elementwise via Pallas.  `n` is a traced f32 scalar."""
    assert mean.shape == x.shape and mean.dtype == x.dtype
    orig_shape = x.shape
    size = int(x.size)
    lane, tile_rows, rows_padded = _slab_geometry(size)
    padded_size = rows_padded * lane

    mean_flat = mean.reshape(-1)
    x_flat = x.reshape(-1)
    if padded_size != size:
        pad = padded_size - size
        mean_flat = jnp.pad(mean_flat, (0, pad))
        x_flat = jnp.pad(x_flat, (0, pad))
    mean2 = mean_flat.reshape(rows_padded, lane)
    x2 = x_flat.reshape(rows_padded, lane)

    n = n.astype(jnp.float32)
    coeffs = jnp.stack([(n - 1.0) / n, 1.0 / n])  # f32[2], lands in SMEM

    grid = (rows_padded // tile_rows,)
    out2 = pl.pallas_call(
        _running_mean_kernel,
        out_shape=jax.ShapeDtypeStruct((rows_padded, lane), x.dtype),
        grid=grid,
        in_specs=[
            pl.BlockSpec(memory_space=pltpu.MemorySpace.SMEM),   # [coeff, 1/n]
            pl.BlockSpec((tile_rows, lane), lambda i: (i, 0)),   # mean tile
            pl.BlockSpec((tile_rows, lane), lambda i: (i, 0)),   # x tile
        ],
        out_specs=pl.BlockSpec((tile_rows, lane), lambda i: (i, 0)),
        compiler_params=pltpu.CompilerParams(
            dimension_semantics=("parallel",),   # lets v7x shard across both TCs
        ),
        # NOTE: input_output_aliases={1: 0} would express the in-place update,
        # but without donating `mean` at the jit boundary XLA inserts a full
        # copy to satisfy the must-alias, and donating would invalidate
        # previously returned means (diverging from the PyTorch module's
        # semantics), so aliasing is intentionally omitted.
    )(coeffs, mean2, x2)

    out_flat = out2.reshape(-1)
    if padded_size != size:
        out_flat = out_flat[:size]
    return out_flat.reshape(orig_shape)


def running_mean_update(mean, x, n):
    # Pass n as a traced f32 scalar so the jit trace is reused for every step.
    return _running_mean_update(mean, x, jnp.float32(n))


class RunningMean:
    """JAX/Pallas port of the PyTorch RunningMean module."""

    def __init__(self):
        self.mean = None
        self.n = 0

    def __call__(self, x):
        self.n += 1
        if self.mean is None:
            # With n == 1 the kernel computes 0*coeff + x*(1/1) == x exactly,
            # matching `self.mean = x` in the PyTorch module.
            self.mean = jnp.zeros_like(x)
        self.mean = running_mean_update(self.mean, x, self.n)
        return self.mean


if __name__ == "__main__":
    key = jax.random.PRNGKey(0)
    k1, k2, k3 = jax.random.split(key, 3)
    shape = (2, 4, 16, 16)  # NCHW, small
    x1 = jax.random.normal(k1, shape, dtype=jnp.float32)
    x2 = jax.random.normal(k2, shape, dtype=jnp.float32)
    x3 = jax.random.normal(k3, shape, dtype=jnp.float32)

    rm = RunningMean()
    m1 = rm(x1)
    m2 = rm(x2)
    m3 = rm(x3)
    jax.block_until_ready(m3)

    # Reference check in plain JAX (same recurrence as the PyTorch module).
    ref = x1
    ref = (ref * 1 + x2) / 2
    ref = (ref * 2 + x3) / 3
    assert jnp.allclose(m3, ref, atol=1e-5, rtol=1e-5), "mismatch vs reference"

    print("KERNEL_OK")
</pallas_src>

<mosaic_0001>
module attributes {stable_mosaic.version = 11 : i64} {
  func.func @_running_mean_kernel(%arg0: i32, %arg1: memref<2xf32, #tpu.memory_space<smem>>, %arg2: memref<16x128xf32, #tpu.memory_space<vmem>>, %arg3: memref<16x128xf32, #tpu.memory_space<vmem>>, %arg4: memref<16x128xf32, #tpu.memory_space<vmem>>) attributes {dimension_semantics = [#tpu.dimension_semantics<parallel>], iteration_bounds = array<i64: 1>, scalar_prefetch = 0 : i64, scratch_operands = 0 : i64, tpu.core_type = #tpu.core_type<tc>, window_params = [{transform_indices = @transform_0, window_bounds = array<i64: 2>}, {transform_indices = @transform_1, window_bounds = array<i64: 16, 128>}, {transform_indices = @transform_2, window_bounds = array<i64: 16, 128>}, {transform_indices = @transform_3, window_bounds = array<i64: 16, 128>}]} {
    %c0 = arith.constant 0 : index
    %0 = memref.load %arg1[%c0] : memref<2xf32, #tpu.memory_space<smem>>
    %c1 = arith.constant 1 : index
    %1 = memref.load %arg1[%c1] : memref<2xf32, #tpu.memory_space<smem>>
    %c0_0 = arith.constant 0 : index
    %c0_1 = arith.constant 0 : index
    %2 = vector.load %arg2[%c0_0, %c0_1] : memref<16x128xf32, #tpu.memory_space<vmem>>, vector<16x128xf32>
    %c0_2 = arith.constant 0 : index
    %c0_3 = arith.constant 0 : index
    %3 = vector.load %arg3[%c0_2, %c0_3] : memref<16x128xf32, #tpu.memory_space<vmem>>, vector<16x128xf32>
    %4 = vector.broadcast %0 : f32 to vector<16x128xf32>
    %5 = arith.mulf %2, %4 : vector<16x128xf32>
    %6 = vector.broadcast %1 : f32 to vector<16x128xf32>
    %7 = arith.mulf %3, %6 : vector<16x128xf32>
    %8 = arith.addf %5, %7 : vector<16x128xf32>
    %c0_4 = arith.constant 0 : index
    %c0_5 = arith.constant 0 : index
    %9 = vector.load %arg4[%c0_4, %c0_5] : memref<16x128xf32, #tpu.memory_space<vmem>>, vector<16x128xf32>
    tpu.vector_store %arg4[%c0_4, %c0_5], %8 {strides = array<i32>} : memref<16x128xf32, #tpu.memory_space<vmem>>, vector<16x128xf32>,
    return
  }
  func.func @transform_0(%arg0: i32) -> i32 {
    %c0_i32 = arith.constant 0 : i32
    %c0_i32_0 = arith.constant 0 : i32
    return %c0_i32 : i32
  }
  func.func @transform_1(%arg0: i32) -> (i32, i32) {
    %c0_i32 = arith.constant 0 : i32
    %c0_i32_0 = arith.constant 0 : i32
    return %arg0, %c0_i32 : i32, i32
  }
  func.func @transform_2(%arg0: i32) -> (i32, i32) {
    %c0_i32 = arith.constant 0 : i32
    %c0_i32_0 = arith.constant 0 : i32
    return %arg0, %c0_i32 : i32, i32
  }
  func.func @transform_3(%arg0: i32) -> (i32, i32) {
    %c0_i32 = arith.constant 0 : i32
    %c0_i32_0 = arith.constant 0 : i32
    return %arg0, %c0_i32 : i32, i32
  }
}

</mosaic_0001>

<llo_original>
// kernel: _running_mean_update.1
$region0: #{_running_mean_update.1}
  #allocation0 [shape = 'u32[]', space=smem, size = 0x4, offset = 0x4, fixed_abs, tag = 'smem constant byte address 0x4 - core index']
  #allocation1 [shape = 'u32[144,128]{1,0:T(1,128)}', space=vmem, size = 0x12000, scoped, tag = 'internal scratch']
  %s0 = inlined_call_operand.vmem [shape: f32[2], index: 0, kind: input, shape index: {}]
  %s1 = inlined_call_operand.vmem [shape: f32[16,128], index: 1, kind: input, shape index: {}]
  %s2 = inlined_call_operand.vmem [shape: f32[16,128], index: 2, kind: input, shape index: {}]
  %s3 = inlined_call_operand.vmem [shape: f32[16,128], index: 3, kind: output, shape index: {}]
  %s4 = sld [smem:[#allocation0]]
  $region26: #{_running_mean_update.1} parent=0
    _
  %s6 = ssub.s32 1, %s4
  %s7 = scalar_select 0, %s6, %s4
  $region1: #{_running_mean_update.1} parent=0
    #allocation2 [shape = 'u8[512]{0}', space=smem, size = 0x200, scoped, tag = 'input window, operand 0, single buffered']
    #allocation3 [shape = 's32[1]{0}', space=sflag, size = 0x4, scoped, tag = 'scoped memory for _running_mean_update.1']
    %8 = vsyncpa [#allocation3], 0
    // Predicated region
    $region2: #{_running_mean_update.1} parent=1 // pred_check
      _
    $region3: #{_running_mean_update.1} parent=1 // pred_check_branch
      %10 = sbr.rel (0) target = $region5
    $region4: #{_running_mean_update.1} parent=1 // pred_region
      %s12 = ssub.s32 16, 16
      %13 = vsyncadd [#allocation3], %s12
      %s15 = sshll.u32 %s0, 4
      %s16 = int_to_ptr.vmem [resolvable:$true] %s15
      %18 = dma.vmem_to_smem %s16, 16, [#allocation2], [#allocation3]
    $region5: #{_running_mean_update.1} parent=1 // pred_fallthru
      _
    // Predicated region
    $region6: #{_running_mean_update.1} parent=1 // pred_check
      _
    $region7: #{_running_mean_update.1} parent=1 // pred_check_branch
      %20 = sbr.rel (0) target = $region9
    $region8: #{_running_mean_update.1} parent=1 // pred_region
      _
    $region9: #{_running_mean_update.1} parent=1 // pred_fallthru
      _
    // Predicated region
    $region10: #{_running_mean_update.1} parent=1 // pred_check
      _
    $region11: #{_running_mean_update.1} parent=1 // pred_check_branch
      %22 = sbr.rel (0) target = $region13
    $region12: #{_running_mean_update.1} parent=1 // pred_region
      _
    $region13: #{_running_mean_update.1} parent=1 // pred_fallthru
      _
    // Predicated region
    $region14: #{_running_mean_update.1} parent=1 // pred_check
      _
    $region15: #{_running_mean_update.1} parent=1 // pred_check_branch
      %24 = sbr.rel (0) target = $region17
    $region16: #{_running_mean_update.1} parent=1 // pred_region
      %25 = dma.done [#allocation3], 16
    $region17: #{_running_mean_update.1} parent=1 // pred_fallthru
      _
    %26 = sfence
    %s27 = sld [smem:[#allocation2]]
    %s28 = sld [smem:[#allocation2 + $0x1]]
    %v29 = vld [vmem:[%s1] sm:$0xff]
    %v30 = vld [vmem:[%s1 + $0x8] sm:$0xff]
    %v31 = vld [vmem:[%s2] sm:$0xff]
    %v32 = vld [vmem:[%s2 + $0x8] sm:$0xff]
    %v33 = vstv %s27
    %v34 = vmul.f32 %v29, %v33
    %v35 = vmul.f32 %v30, %v33
    %v36 = vstv %s28
    %v37 = vmul.f32 %v31, %v36
    %v38 = vmul.f32 %v32, %v36
    %v39 = vadd.f32 %v34, %v37
    %v40 = vadd.f32 %v35, %v38
    %41 = vst [vmem:[%s3] sm:$0xff] %v39
    %42 = vst [vmem:[%s3 + $0x8] sm:$0xff] %v40
    // Predicated region
    $region18: #{_running_mean_update.1} parent=1 // pred_check
      _
    $region19: #{_running_mean_update.1} parent=1 // pred_check_branch
      %44 = sbr.rel (0) target = $region21
    $region20: #{_running_mean_update.1} parent=1 // pred_region
      _
    $region21: #{_running_mean_update.1} parent=1 // pred_fallthru
      _
    // Predicated region
    $region22: #{_running_mean_update.1} parent=1 // pred_check
      _
    $region23: #{_running_mean_update.1} parent=1 // pred_check_branch
      %46 = sbr.rel (0) target = $region25
    $region24: #{_running_mean_update.1} parent=1 // pred_region
      _
    $region25: #{_running_mean_update.1} parent=1 // pred_fallthru
      _
    %47 = vsyncpa [#allocation3], 1

</llo_original>
